<compile_context>
chip_gen: v5e
topology: v5e:2x2
jax: 0.10.0
libtpu: 0.0.40
codegen_flags: <defaults>
</compile_context>

<pallas_src>
import functools

import jax
import jax.numpy as jnp
from jax import lax
from jax.experimental import pallas as pl
from jax.experimental.pallas import tpu as pltpu


def _round_up(x, m):
    return ((x + m - 1) // m) * m


def _weighted_ce_partial_kernel(logits_ref, targets_ref, wrow_ref, out_ref, *,
                                n_rows):
    """Per-tile partial numerator of the weighted cross entropy.

    Writes sum_over_valid_rows( w[t_i] * (logsumexp(x_i) - x_i[t_i]) ) broadcast
    into a lane-dense (1, 8, 128) output block (one independent block per tile,
    so the row grid axis can be 'parallel').
    """
    pid = pl.program_id(0)

    x = logits_ref[...].astype(jnp.float32)            # (TN, C) f32 in-vreg cast
    t = targets_ref[...]                               # (TN, 1) int32
    w = wrow_ref[...]                                  # (TN, 1) f32 = weight[target]
    tn, c = x.shape

    # numerically stable log-sum-exp over the (unpadded) class axis
    m = jnp.max(x, axis=-1, keepdims=True)                                  # (TN,1)
    lse = jnp.log(jnp.sum(jnp.exp(x - m), axis=-1, keepdims=True)) + m      # (TN,1)

    # fused one-hot select of the target logit (no full log-softmax temp)
    col = lax.broadcasted_iota(jnp.int32, (tn, c), 1)
    sel = jnp.sum(jnp.where(col == t, x, 0.0), axis=-1, keepdims=True)      # (TN,1)

    nll = lse - sel                                                         # (TN,1)

    # Mask rows past N (ragged last tile) with a select, NOT a multiply by w==0:
    # garbage rows may produce NaN and 0*NaN = NaN.
    row = lax.broadcasted_iota(jnp.int32, (tn, 1), 0)
    valid = (pid * tn + row) < n_rows
    contrib = jnp.where(valid, w * nll, 0.0)                                # (TN,1)

    partial = jnp.sum(contrib)                                              # scalar
    out_ref[...] = partial + jnp.zeros(out_ref.shape, jnp.float32)


def classification_loss(logits, targets, empty_weight, w=None, row_tile=1024):
    """Pallas equivalent of ClassificationLoss.forward.

    logits:       (N, C) float array (any float dtype; kept native in HBM)
    targets:      (N,)   integer class indices in [0, C)
    empty_weight: (C,)   per-class weights (weight[0] = eos_coef)
    w:            optional scalar multiplier (mirrors `self._w`)
    """
    # TODO(synk): PyTorch cross_entropy's default ignore_index=-100 is not handled.
    # Note: if the selected weights sum to 0 the result is NaN/Inf (PyTorch too).
    n, c = logits.shape
    t_i32 = targets.astype(jnp.int32)
    itemsize = jnp.dtype(logits.dtype).itemsize

    # --- row-tile sizing from a VMEM budget (double-buffered input tiles).
    # cp_internal: lanes Mosaic physically allocates per row for the logits tile.
    cp_internal = _round_up(c, 128)
    per_row_bytes = 2 * (cp_internal * itemsize + 2 * 128 * 4)  # logits + targets + w
    vmem_budget = 24 * 1024 * 1024
    max_rows = max(vmem_budget // per_row_bytes, 8)
    tn = max((min(row_tile, max_rows) // 8) * 8, 8)
    if tn >= n:
        tn = n                       # single block: full-dim escape from the 8-rule
    num_tiles = pl.cdiv(n, tn)

    # Tiny O(N) side work stays in the wrapper: per-row weight gather and the
    # denominator (it does not need the logits pipeline at all).
    w_row = empty_weight.astype(jnp.float32)[t_i32]              # (N,)
    den = jnp.sum(w_row)
    targets_2d = t_i32.reshape(n, 1)
    w_row_2d = w_row.reshape(n, 1)

    cost = pl.CostEstimate(
        flops=7 * n * c,
        transcendentals=n * (c + 1),
        bytes_accessed=n * c * itemsize + 2 * n * 4 + num_tiles * 8 * 128 * 4,
    )

    partials = pl.pallas_call(
        functools.partial(_weighted_ce_partial_kernel, n_rows=n),
        out_shape=jax.ShapeDtypeStruct((num_tiles, 8, 128), jnp.float32),
        grid=(num_tiles,),
        in_specs=[
            pl.BlockSpec((tn, c), lambda i: (i, 0)),   # unpadded logits, native dtype
            pl.BlockSpec((tn, 1), lambda i: (i, 0)),   # targets
            pl.BlockSpec((tn, 1), lambda i: (i, 0)),   # weight[target]
        ],
        out_specs=pl.BlockSpec((1, 8, 128), lambda i: (i, 0, 0)),
        compiler_params=pltpu.CompilerParams(
            dimension_semantics=("parallel",),          # independent tiles -> megacore
            vmem_limit_bytes=48 * 1024 * 1024,
        ),
        cost_estimate=cost,
    )(logits, targets_2d, w_row_2d)

    ce = jnp.sum(partials[:, 0, 0]) / den
    if w:  # matches `if self._w:` in the PyTorch module
        ce = ce * w
    return ce


def _reference_loss(logits, targets, empty_weight):
    # pure-JAX reference (== F.cross_entropy(..., weight, reduction='mean'))
    logp = jax.nn.log_softmax(logits.astype(jnp.float32), axis=-1)
    t = targets.astype(jnp.int32)
    nll = -jnp.take_along_axis(logp, t[:, None], axis=-1)[:, 0]
    wt = empty_weight.astype(jnp.float32)[t]
    return jnp.sum(wt * nll) / jnp.sum(wt)


if __name__ == "__main__":
    num_classes = 4            # module default is 1; use a small non-trivial value
    eos_coef = 0.1
    C = num_classes + 1

    # deterministic parameter init (mirrors torch.ones(...); [0] = eos_coef)
    empty_weight = jnp.ones((C,), dtype=jnp.float32).at[0].set(eos_coef)

    key = jax.random.PRNGKey(0)
    k1, k2, k3, k4 = jax.random.split(key, 4)

    # Case 1: tiny single-tile problem, f32 logits, w=None
    N1 = 8
    logits1 = jax.random.normal(k1, (N1, C), dtype=jnp.float32)
    targets1 = jax.random.randint(k2, (N1,), 0, C, dtype=jnp.int32)
    loss1 = jax.block_until_ready(
        classification_loss(logits1, targets1, empty_weight, w=None))
    ref1 = _reference_loss(logits1, targets1, empty_weight)
    assert jnp.allclose(loss1, ref1, rtol=1e-5, atol=1e-5), (loss1, ref1)

    # Case 2: multi-tile 'parallel' grid with a ragged last tile, bf16 logits, w=2.0
    N2 = 300
    logits2 = jax.random.normal(k3, (N2, C), dtype=jnp.float32).astype(jnp.bfloat16)
    targets2 = jax.random.randint(k4, (N2,), 0, C, dtype=jnp.int32)
    loss2 = jax.block_until_ready(
        classification_loss(logits2, targets2, empty_weight, w=2.0, row_tile=128))
    ref2 = 2.0 * _reference_loss(logits2, targets2, empty_weight)
    assert jnp.allclose(loss2, ref2, rtol=1e-4, atol=1e-4), (loss2, ref2)

    print("KERNEL_OK")
</pallas_src>

<mosaic_0001>
module attributes {stable_mosaic.version = 11 : i64} {
  func.func @_weighted_ce_partial_kernel(%arg0: i32, %arg1: memref<8x5xf32, #tpu.memory_space<vmem>>, %arg2: memref<8x1xi32, #tpu.memory_space<vmem>>, %arg3: memref<8x1xf32, #tpu.memory_space<vmem>>, %arg4: memref<1x8x128xf32, #tpu.memory_space<vmem>>) attributes {dimension_semantics = [#tpu.dimension_semantics<parallel>], iteration_bounds = array<i64: 1>, scalar_prefetch = 0 : i64, scratch_operands = 0 : i64, tpu.core_type = #tpu.core_type<tc>, window_params = [{transform_indices = @transform_0, window_bounds = array<i64: 8, 5>}, {transform_indices = @transform_1, window_bounds = array<i64: 8, 1>}, {transform_indices = @transform_2, window_bounds = array<i64: 8, 1>}, {transform_indices = @transform_3, window_bounds = array<i64: 1, 8, 128>}]} {
    %c0 = arith.constant 0 : index
    %c0_0 = arith.constant 0 : index
    %0 = vector.load %arg1[%c0, %c0_0] : memref<8x5xf32, #tpu.memory_space<vmem>>, vector<8x5xf32>
    %c0_1 = arith.constant 0 : index
    %c0_2 = arith.constant 0 : index
    %1 = vector.load %arg2[%c0_1, %c0_2] : memref<8x1xi32, #tpu.memory_space<vmem>>, vector<8x1xi32>
    %c0_3 = arith.constant 0 : index
    %c0_4 = arith.constant 0 : index
    %2 = vector.load %arg3[%c0_3, %c0_4] : memref<8x1xf32, #tpu.memory_space<vmem>>, vector<8x1xf32>
    %cst = arith.constant dense<0xFF800000> : vector<8xf32>
    %3 = vector.multi_reduction <maximumf>, %0, %cst [1] : vector<8x5xf32> to vector<8xf32>
    %4 = vector.shape_cast %3 : vector<8xf32> to vector<8x1xf32>
    %5 = vector.broadcast %4 : vector<8x1xf32> to vector<8x5xf32>
    %6 = arith.subf %0, %5 : vector<8x5xf32>
    %7 = math.exp %6 : vector<8x5xf32>
    %cst_5 = arith.constant dense<0.000000e+00> : vector<8xf32>
    %8 = vector.multi_reduction <add>, %7, %cst_5 [1] : vector<8x5xf32> to vector<8xf32>
    %9 = vector.shape_cast %8 : vector<8xf32> to vector<8x1xf32>
    %10 = math.log %9 : vector<8x1xf32>
    %11 = arith.addf %10, %4 : vector<8x1xf32>
    %12 = tpu.iota {dimensions = array<i32: 1>} : vector<8x5xi32>
    %13 = vector.broadcast %1 : vector<8x1xi32> to vector<8x5xi32>
    %14 = arith.cmpi eq, %12, %13 : vector<8x5xi32>
    %cst_6 = arith.constant 0.000000e+00 : f32
    %15 = vector.broadcast %cst_6 : f32 to vector<8x5xf32>
    %16 = arith.select %14, %0, %15 : vector<8x5xi1>, vector<8x5xf32>
    %cst_7 = arith.constant dense<0.000000e+00> : vector<8xf32>
    %17 = vector.multi_reduction <add>, %16, %cst_7 [1] : vector<8x5xf32> to vector<8xf32>
    %18 = vector.shape_cast %17 : vector<8xf32> to vector<8x1xf32>
    %19 = arith.subf %11, %18 : vector<8x1xf32>
    %20 = tpu.iota {dimensions = array<i32: 0>} : vector<8x1xi32>
    %c8_i32 = arith.constant 8 : i32
    %21 = arith.muli %arg0, %c8_i32 : i32
    %22 = vector.broadcast %21 : i32 to vector<8x1xi32>
    %23 = arith.addi %22, %20 : vector<8x1xi32>
    %c8_i32_8 = arith.constant 8 : i32
    %24 = vector.broadcast %c8_i32_8 : i32 to vector<8x1xi32>
    %25 = arith.cmpi slt, %23, %24 : vector<8x1xi32>
    %26 = arith.mulf %2, %19 : vector<8x1xf32>
    %cst_9 = arith.constant 0.000000e+00 : f32
    %27 = vector.broadcast %cst_9 : f32 to vector<8x1xf32>
    %28 = arith.select %25, %26, %27 : vector<8x1xi1>, vector<8x1xf32>
    %29 = vector.shape_cast %28 : vector<8x1xf32> to vector<1x8x1xf32>
    %cst_10 = arith.constant dense<0.000000e+00> : vector<1xf32>
    %30 = vector.multi_reduction <add>, %29, %cst_10 [1, 2] : vector<1x8x1xf32> to vector<1xf32>
    %31 = vector.shape_cast %30 : vector<1xf32> to vector<1x1x1xf32>
    %32 = vector.extract %31[0, 0, 0] : f32 from vector<1x1x1xf32>
    %cst_11 = arith.constant 0.000000e+00 : f32
    %33 = vector.broadcast %cst_11 : f32 to vector<1x8x128xf32>
    %34 = vector.broadcast %32 : f32 to vector<1x8x128xf32>
    %35 = arith.addf %34, %33 : vector<1x8x128xf32>
    %c0_12 = arith.constant 0 : index
    %c0_13 = arith.constant 0 : index
    %c0_14 = arith.constant 0 : index
    %36 = vector.load %arg4[%c0_12, %c0_13, %c0_14] : memref<1x8x128xf32, #tpu.memory_space<vmem>>, vector<1x8x128xf32>
    tpu.vector_store %arg4[%c0_12, %c0_13, %c0_14], %35 {strides = array<i32>} : memref<1x8x128xf32, #tpu.memory_space<vmem>>, vector<1x8x128xf32>,
    return
  }
  func.func @transform_0(%arg0: i32) -> (i32, i32) {
    %c0_i32 = arith.constant 0 : i32
    %c0_i32_0 = arith.constant 0 : i32
    return %arg0, %c0_i32 : i32, i32
  }
  func.func @transform_1(%arg0: i32) -> (i32, i32) {
    %c0_i32 = arith.constant 0 : i32
    %c0_i32_0 = arith.constant 0 : i32
    return %arg0, %c0_i32 : i32, i32
  }
  func.func @transform_2(%arg0: i32) -> (i32, i32) {
    %c0_i32 = arith.constant 0 : i32
    %c0_i32_0 = arith.constant 0 : i32
    return %arg0, %c0_i32 : i32, i32
  }
  func.func @transform_3(%arg0: i32) -> (i32, i32, i32) {
    %c0_i32 = arith.constant 0 : i32
    %c0_i32_0 = arith.constant 0 : i32
    %c0_i32_1 = arith.constant 0 : i32
    return %arg0, %c0_i32, %c0_i32_0 : i32, i32, i32
  }
}

</mosaic_0001>

<llo_original>
// kernel: tpu_custom_call.1
$region0: #{tpu_custom_call.1}
  #allocation0 [shape = 'u32[]', space=smem, size = 0x4, offset = 0x4, fixed_abs, tag = 'smem constant byte address 0x4 - core index']
  #allocation1 [shape = 'u32[72,128]{1,0:T(1,128)}', space=vmem, size = 0x9000, scoped, tag = 'internal scratch']
  %s0 = inlined_call_operand.vmem [shape: f32[8,5], index: 0, kind: input, shape index: {}]
  %s1 = inlined_call_operand.vmem [shape: s32[8,1], index: 1, kind: input, shape index: {}]
  %s2 = inlined_call_operand.vmem [shape: f32[8,1], index: 2, kind: input, shape index: {}]
  %s3 = inlined_call_operand.hbm [shape: f32[1,8,128], index: 3, kind: output, shape index: {}]
  %s4 = sld [smem:[#allocation0]]
  $region22: #{tpu_custom_call.1} parent=0
    _
  %s6 = ssub.s32 1, %s4
  %s7 = scalar_select 0, %s6, %s4
  $region1: #{tpu_custom_call.1} parent=0
    #allocation2 [shape = 'u8[4096]{0}', space=vmem, size = 0x1000, scoped, tag = 'output window, operand 0, single buffered']
    #allocation3 [shape = 's32[1]{0}', space=sflag, size = 0x4, scoped, tag = 'scoped memory for tpu_custom_call.1']
    %8 = vsyncpa [#allocation3], 0
    // Predicated region
    $region2: #{tpu_custom_call.1} parent=1 // pred_check
      _
    $region3: #{tpu_custom_call.1} parent=1 // pred_check_branch
      %10 = sbr.rel (0) target = $region5
    $region4: #{tpu_custom_call.1} parent=1 // pred_region
      _
    $region5: #{tpu_custom_call.1} parent=1 // pred_fallthru
      _
    // Predicated region
    $region6: #{tpu_custom_call.1} parent=1 // pred_check
      _
    $region7: #{tpu_custom_call.1} parent=1 // pred_check_branch
      %12 = sbr.rel (0) target = $region9
    $region8: #{tpu_custom_call.1} parent=1 // pred_region
      _
    $region9: #{tpu_custom_call.1} parent=1 // pred_fallthru
      _
    // Predicated region
    $region10: #{tpu_custom_call.1} parent=1 // pred_check
      _
    $region11: #{tpu_custom_call.1} parent=1 // pred_check_branch
      %14 = sbr.rel (0) target = $region13
    $region12: #{tpu_custom_call.1} parent=1 // pred_region
      _
    $region13: #{tpu_custom_call.1} parent=1 // pred_fallthru
      _
    %v15 = vld [vmem:[%s0] sm:$0xff]
    %v16 = vld [vmem:[%s1] sm:$0xff]
    %v17 = vld [vmem:[%s2] sm:$0xff]
    %vm18 = vcmask 39936
    %v19 = vsel %vm18, %v15, -inf
    %20 = vmax.xlane.f32.xlu0 %v19
    %v21 = vpop.xlane.xlu0 %20
    %v22 = vsub.f32 %v15, %v21
    %v23 = vmul.f32 %v22, 1.442695
    %v24 = vpow.pop %v23
    %v25 = vsel %vm18, %v24, 0.0
    %26 = vadd.xlane.f32.xlu0 %v25
    %v27 = vpop.xlane.xlu0 %26
    %v28 = vlog2.pop %v27
    %v29 = vmul.f32 %v28, 0.6931472
    %v30 = vadd.f32 %v29, %v21
    %v31 = vlaneseq
    %v32 = vand.u32 %v31, 127
    %33 = vset.pattern.permute.xlu0 0
    %34 = vperm.xlu0 %33, %v16
    %v35 = vpop.permute.xlu0 %34
    %vm36 = vcmp.eq.s32.totalorder %v32, %v35
    %v37 = vsel %vm36, %v15, 0.0
    %v38 = vsel %vm18, %v37, 0.0
    %39 = vadd.xlane.f32.xlu0 %v38
    %v40 = vpop.xlane.xlu0 %39
    %v41 = vsub.f32 %v30, %v40
    %v42 = vlaneseq
    %v43 = vshrl.u32 %v42, 7
    %s44 = smul.u32 0, 8
    %v45 = vstv %s44
    %v46 = vadd.s32 %v45, %v43
    %vm47 = vcmp.lt.s32.totalorder %v46, 8
    %v48 = vmul.f32 %v17, %v41
    %v49 = vsel %vm47, %v48, 0.0
    %vm50 = vcmask 7168
    %v51 = vsel %vm50, %v49, 0.0
    %52 = vadd.xlane.f32.xlu0 %v51
    %v53 = vpop.xlane.xlu0 %52
    %v54 = vrot.slane %v53, 4
    %v55 = vadd.f32 %v53, %v54
    %v56 = vrot.slane %v55, 2
    %v57 = vadd.f32 %v55, %v56
    %v58 = vrot.slane %v57, 1
    %v59 = vadd.f32 %v57, %v58
    %s60 = vtos %v59
    %v61 = vstv %s60
    %v62 = vadd.f32 %v61, 0.0
    %63 = vst [vmem:[#allocation2] sm:$0xff] %v62
    // Predicated region
    $region14: #{tpu_custom_call.1} parent=1 // pred_check
      _
    $region15: #{tpu_custom_call.1} parent=1 // pred_check_branch
      %65 = sbr.rel (0) target = $region17
    $region16: #{tpu_custom_call.1} parent=1 // pred_region
      %67 = vsyncadd [#allocation3], 0
      %s69 = sshll.u32 [#allocation2], 4
      %s70 = int_to_ptr.vmem [resolvable:$true] %s69
      %s71 = sshll.u32 %s3, 4
      %s72 = int_to_ptr.hbm [resolvable:$true] %s71
      %74 = dma.vmem_to_hbm [thread:$0]  %s70, 128, %s72, [#allocation3]
    $region17: #{tpu_custom_call.1} parent=1 // pred_fallthru
      _
    // Predicated region
    $region18: #{tpu_custom_call.1} parent=1 // pred_check
      _
    $region19: #{tpu_custom_call.1} parent=1 // pred_check_branch
      %76 = sbr.rel (0) target = $region21
    $region20: #{tpu_custom_call.1} parent=1 // pred_region
      %78 = dma.done [#allocation3], 128
    $region21: #{tpu_custom_call.1} parent=1 // pred_fallthru
      _
    %79 = vsyncpa [#allocation3], 1

</llo_original>
